<compile_context>
chip_gen: v5e
topology: v5e:2x2
jax: 0.10.0
libtpu: 0.0.40
codegen_flags: <defaults>
</compile_context>

<pallas_src>
import jax
import jax.numpy as jnp
from jax.experimental import pallas as pl
from jax.experimental.pallas import tpu as pltpu

EPS = 1e-5


def _layernorm2d_kernel(x_ref, g_ref, b_ref, o_ref):
    # x_ref: (Nb, C, T) block of the (N, C, H*W) tensor.
    # Normalize every (n, t) column over the channel (sublane) axis.
    x = x_ref[...].astype(jnp.float32)                         # (Nb, C, T)
    mean = jnp.mean(x, axis=1, keepdims=True)                  # (Nb, 1, T)
    mean_sq = jnp.mean(x * x, axis=1, keepdims=True)           # (Nb, 1, T)
    var = jnp.maximum(mean_sq - mean * mean, 0.0)              # guard cancellation
    inv = jax.lax.rsqrt(var + EPS)                             # (Nb, 1, T)
    g = g_ref[...].astype(jnp.float32)[None]                   # (1, C, 1)
    b = b_ref[...].astype(jnp.float32)[None]                   # (1, C, 1)
    o_ref[...] = ((x - mean) * inv * g + b).astype(o_ref.dtype)


def _choose_tiling(N, C, HW, itemsize, max_block_bytes):
    """Pick (Nb, hw_tile) for block shape (Nb, C, hw_tile)."""
    per_col_bytes = C * itemsize
    if HW <= 512:
        # Small spatial extent: keep the full spatial extent on lanes (block ==
        # full dim, so no (8,128) issue even for HW like 49) and batch images
        # per step to amortize the ~0.35 us per-grid-step overhead.
        hw_tile = HW
        nb = max(1, min(N, 16, max_block_bytes // max(per_col_bytes * HW, 1)))
    else:
        # Large spatial extent: fixed lane-dense tile; tile-size gains flatten
        # past ~512-1024 lanes, and a cdiv grid handles the ragged edge.
        nb = 1
        cap = max(128, (max_block_bytes // max(per_col_bytes, 1)) // 128 * 128)
        hw_tile = int(min(1024, cap))
    return nb, hw_tile


def layernorm2d(x_nchw, gamma, beta, *, max_block_bytes=2 * 1024 * 1024):
    """LayerNorm2D forward. x_nchw: (N, C, H, W); gamma/beta: (C,)."""
    N, C, H, W = x_nchw.shape
    HW = H * W
    itemsize = jnp.dtype(x_nchw.dtype).itemsize

    # Free, contiguous reshape (no HBM traffic), unlike an NCHW<->NHWC transpose.
    x3d = x_nchw.reshape(N, C, HW)
    nb, hw_tile = _choose_tiling(N, C, HW, itemsize, max_block_bytes)

    grid = (pl.cdiv(N, nb), pl.cdiv(HW, hw_tile))

    # Explicit VMEM budget: 2x double-buffered in + out tiles, a few f32
    # temporaries, plus headroom; clamped to stay well under v7x's 64 MiB.
    block_elems = nb * C * hw_tile
    footprint = 4 * block_elems * itemsize + 4 * block_elems * 4 + (2 << 20)
    vmem_limit = int(min(max(footprint, 16 << 20), 48 << 20))

    g2d = gamma.reshape(C, 1)
    b2d = beta.reshape(C, 1)

    out3d = pl.pallas_call(
        _layernorm2d_kernel,
        out_shape=jax.ShapeDtypeStruct((N, C, HW), x_nchw.dtype),
        grid_spec=pltpu.PrefetchScalarGridSpec(
            num_scalar_prefetch=0,
            grid=grid,
            in_specs=[
                pl.BlockSpec((nb, C, hw_tile), lambda n, t: (n, 0, t)),
                pl.BlockSpec((C, 1), lambda n, t: (0, 0)),
                pl.BlockSpec((C, 1), lambda n, t: (0, 0)),
            ],
            out_specs=pl.BlockSpec((nb, C, hw_tile), lambda n, t: (n, 0, t)),
        ),
        compiler_params=pltpu.CompilerParams(
            # Every grid step is independent -> both axes parallel, letting
            # megacore parts split steps across TensorCores.
            dimension_semantics=("parallel", "parallel"),
            vmem_limit_bytes=vmem_limit,
        ),
    )(x3d, g2d, b2d)
    return out3d.reshape(N, C, H, W)


def _reference(x_nchw, gamma, beta):
    x = jnp.transpose(x_nchw, (0, 2, 3, 1)).astype(jnp.float32)
    mean = jnp.mean(x, axis=-1, keepdims=True)
    var = jnp.mean((x - mean) ** 2, axis=-1, keepdims=True)
    y = (x - mean) * jax.lax.rsqrt(var + EPS) * gamma + beta
    return jnp.transpose(y, (0, 3, 1, 2)).astype(x_nchw.dtype)


if __name__ == "__main__":
    key = jax.random.PRNGKey(0)
    N, C, H, W = 2, 4, 16, 16
    x = jax.random.normal(key, (N, C, H, W), dtype=jnp.float32)

    # nn.LayerNorm default init: weight=1, bias=0.
    gamma = jnp.ones((C,), dtype=jnp.float32)
    beta = jnp.zeros((C,), dtype=jnp.float32)

    out = layernorm2d(x, gamma, beta)
    out = jax.block_until_ready(out)

    ref = _reference(x, gamma, beta)
    assert out.shape == (N, C, H, W)
    assert jnp.max(jnp.abs(out - ref)) < 2e-5

    print("KERNEL_OK")
</pallas_src>

<mosaic_0001>
module attributes {stable_mosaic.version = 11 : i64} {
  func.func @_layernorm2d_kernel(%arg0: i32, %arg1: i32, %arg2: memref<2x4x256xf32, #tpu.memory_space<vmem>>, %arg3: memref<4x1xf32, #tpu.memory_space<vmem>>, %arg4: memref<4x1xf32, #tpu.memory_space<vmem>>, %arg5: memref<2x4x256xf32, #tpu.memory_space<vmem>>) attributes {dimension_semantics = [#tpu.dimension_semantics<parallel>, #tpu.dimension_semantics<parallel>], iteration_bounds = array<i64: 1, 1>, scalar_prefetch = 0 : i64, scratch_operands = 0 : i64, tpu.core_type = #tpu.core_type<tc>, window_params = [{transform_indices = @transform_0, window_bounds = array<i64: 2, 4, 256>}, {pipeline_mode = #tpu.pipeline_mode<synchronous>, transform_indices = @transform_1, window_bounds = array<i64: 4, 1>}, {pipeline_mode = #tpu.pipeline_mode<synchronous>, transform_indices = @transform_2, window_bounds = array<i64: 4, 1>}, {transform_indices = @transform_3, window_bounds = array<i64: 2, 4, 256>}]} {
    %c0 = arith.constant 0 : index
    %c0_0 = arith.constant 0 : index
    %c0_1 = arith.constant 0 : index
    %0 = vector.load %arg2[%c0, %c0_0, %c0_1] : memref<2x4x256xf32, #tpu.memory_space<vmem>>, vector<2x4x256xf32>
    %cst = arith.constant dense<0.000000e+00> : vector<2x256xf32>
    %1 = vector.multi_reduction <add>, %0, %cst [1] : vector<2x4x256xf32> to vector<2x256xf32>
    %2 = vector.shape_cast %1 : vector<2x256xf32> to vector<2x1x256xf32>
    %cst_2 = arith.constant 4.000000e+00 : f32
    %3 = vector.broadcast %cst_2 : f32 to vector<2x1x256xf32>
    %4 = arith.divf %2, %3 : vector<2x1x256xf32>
    %5 = arith.mulf %0, %0 : vector<2x4x256xf32>
    %cst_3 = arith.constant dense<0.000000e+00> : vector<2x256xf32>
    %6 = vector.multi_reduction <add>, %5, %cst_3 [1] : vector<2x4x256xf32> to vector<2x256xf32>
    %7 = vector.shape_cast %6 : vector<2x256xf32> to vector<2x1x256xf32>
    %cst_4 = arith.constant 4.000000e+00 : f32
    %8 = vector.broadcast %cst_4 : f32 to vector<2x1x256xf32>
    %9 = arith.divf %7, %8 : vector<2x1x256xf32>
    %10 = arith.mulf %4, %4 : vector<2x1x256xf32>
    %11 = arith.subf %9, %10 : vector<2x1x256xf32>
    %cst_5 = arith.constant 0.000000e+00 : f32
    %12 = vector.broadcast %cst_5 : f32 to vector<2x1x256xf32>
    %13 = arith.maximumf %11, %12 : vector<2x1x256xf32>
    %cst_6 = arith.constant 9.99999974E-6 : f32
    %14 = vector.broadcast %cst_6 : f32 to vector<2x1x256xf32>
    %15 = arith.addf %13, %14 : vector<2x1x256xf32>
    %16 = math.rsqrt %15 : vector<2x1x256xf32>
    %c0_7 = arith.constant 0 : index
    %c0_8 = arith.constant 0 : index
    %17 = vector.load %arg3[%c0_7, %c0_8] : memref<4x1xf32, #tpu.memory_space<vmem>>, vector<4x1xf32>
    %18 = vector.shape_cast %17 : vector<4x1xf32> to vector<1x4x1xf32>
    %c0_9 = arith.constant 0 : index
    %c0_10 = arith.constant 0 : index
    %19 = vector.load %arg4[%c0_9, %c0_10] : memref<4x1xf32, #tpu.memory_space<vmem>>, vector<4x1xf32>
    %20 = vector.shape_cast %19 : vector<4x1xf32> to vector<1x4x1xf32>
    %21 = vector.broadcast %4 : vector<2x1x256xf32> to vector<2x4x256xf32>
    %22 = arith.subf %0, %21 : vector<2x4x256xf32>
    %23 = vector.broadcast %16 : vector<2x1x256xf32> to vector<2x4x256xf32>
    %24 = arith.mulf %22, %23 : vector<2x4x256xf32>
    %25 = vector.broadcast %18 : vector<1x4x1xf32> to vector<2x4x256xf32>
    %26 = arith.mulf %24, %25 : vector<2x4x256xf32>
    %27 = vector.broadcast %20 : vector<1x4x1xf32> to vector<2x4x256xf32>
    %28 = arith.addf %26, %27 : vector<2x4x256xf32>
    %c0_11 = arith.constant 0 : index
    %c0_12 = arith.constant 0 : index
    %c0_13 = arith.constant 0 : index
    %29 = vector.load %arg5[%c0_11, %c0_12, %c0_13] : memref<2x4x256xf32, #tpu.memory_space<vmem>>, vector<2x4x256xf32>
    tpu.vector_store %arg5[%c0_11, %c0_12, %c0_13], %28 {strides = array<i32>} : memref<2x4x256xf32, #tpu.memory_space<vmem>>, vector<2x4x256xf32>,
    return
  }
  func.func @transform_0(%arg0: i32, %arg1: i32) -> (i32, i32, i32) {
    %c0_i32 = arith.constant 0 : i32
    %c0_i32_0 = arith.constant 0 : i32
    return %arg0, %c0_i32, %arg1 : i32, i32, i32
  }
  func.func @transform_1(%arg0: i32, %arg1: i32) -> (i32, i32) {
    %c0_i32 = arith.constant 0 : i32
    %c0_i32_0 = arith.constant 0 : i32
    %c0_i32_1 = arith.constant 0 : i32
    return %c0_i32, %c0_i32_0 : i32, i32
  }
  func.func @transform_2(%arg0: i32, %arg1: i32) -> (i32, i32) {
    %c0_i32 = arith.constant 0 : i32
    %c0_i32_0 = arith.constant 0 : i32
    %c0_i32_1 = arith.constant 0 : i32
    return %c0_i32, %c0_i32_0 : i32, i32
  }
  func.func @transform_3(%arg0: i32, %arg1: i32) -> (i32, i32, i32) {
    %c0_i32 = arith.constant 0 : i32
    %c0_i32_0 = arith.constant 0 : i32
    return %arg0, %c0_i32, %arg1 : i32, i32, i32
  }
}

</mosaic_0001>

<llo_original>
// kernel: tpu_custom_call.1
$region0: #{tpu_custom_call.1}
  #allocation0 [shape = 'u32[]', space=smem, size = 0x4, offset = 0x4, fixed_abs, tag = 'smem constant byte address 0x4 - core index']
  #allocation1 [shape = 'u32[72,128]{1,0:T(1,128)}', space=vmem, size = 0x9000, scoped, tag = 'internal scratch']
  %s0 = inlined_call_operand.hbm [shape: f32[2,4,256], index: 0, kind: input, shape index: {}]
  %s1 = inlined_call_operand.vmem [shape: f32[4,1], index: 1, kind: input, shape index: {}]
  %s2 = inlined_call_operand.vmem [shape: f32[4,1], index: 2, kind: input, shape index: {}]
  %s3 = inlined_call_operand.hbm [shape: f32[2,4,256], index: 3, kind: output, shape index: {}]
  %s4 = sld [smem:[#allocation0]]
  $region26: #{tpu_custom_call.1} parent=0
    _
  %s6 = ssub.s32 1, %s4
  %s7 = scalar_select 0, %s6, %s4
  $region1: #{tpu_custom_call.1} parent=0
    #allocation2 [shape = 'u8[8192]{0}', space=vmem, size = 0x2000, scoped, tag = 'input window, operand 0, single buffered']
    #allocation3 [shape = 's32[1]{0}', space=sflag, size = 0x4, scoped, tag = 'scoped memory for tpu_custom_call.1']
    #allocation4 [shape = 's32[1]{0}', space=sflag, size = 0x4, scoped, tag = 'scoped memory for tpu_custom_call.1']
    #allocation5 [shape = 'u8[8192]{0}', space=vmem, size = 0x2000, scoped, tag = 'output window, operand 0, single buffered']
    %8 = vsyncpa [#allocation3], 0
    %9 = vsyncpa [#allocation4], 0
    // Predicated region
    $region2: #{tpu_custom_call.1} parent=1 // pred_check
      _
    $region3: #{tpu_custom_call.1} parent=1 // pred_check_branch
      %11 = sbr.rel (0) target = $region5
    $region4: #{tpu_custom_call.1} parent=1 // pred_region
      %13 = vsyncadd [#allocation3], 0
      %s14 = sshll.u32 %s0, 4
      %s15 = int_to_ptr.hbm [resolvable:$true] %s14
      %s16 = sshll.u32 [#allocation2], 4
      %s17 = int_to_ptr.vmem [resolvable:$true] %s16
      %22 = dma.hbm_to_vmem [thread:$0]  %s15, 256, %s17, [#allocation3], 128, 128, 8
    $region5: #{tpu_custom_call.1} parent=1 // pred_fallthru
      _
    // Predicated region
    $region6: #{tpu_custom_call.1} parent=1 // pred_check
      _
    $region7: #{tpu_custom_call.1} parent=1 // pred_check_branch
      %24 = sbr.rel (0) target = $region9
    $region8: #{tpu_custom_call.1} parent=1 // pred_region
      _
    $region9: #{tpu_custom_call.1} parent=1 // pred_fallthru
      _
    // Predicated region
    $region10: #{tpu_custom_call.1} parent=1 // pred_check
      _
    $region11: #{tpu_custom_call.1} parent=1 // pred_check_branch
      %26 = sbr.rel (0) target = $region13
    $region12: #{tpu_custom_call.1} parent=1 // pred_region
      _
    $region13: #{tpu_custom_call.1} parent=1 // pred_fallthru
      _
    // Predicated region
    $region14: #{tpu_custom_call.1} parent=1 // pred_check
      _
    $region15: #{tpu_custom_call.1} parent=1 // pred_check_branch
      %28 = sbr.rel (0) target = $region17
    $region16: #{tpu_custom_call.1} parent=1 // pred_region
      %30 = dma.done [#allocation3], 256
    $region17: #{tpu_custom_call.1} parent=1 // pred_fallthru
      _
    %v31 = vld [vmem:[#allocation2] sm:$0xff]
    %v32 = vld [vmem:[#allocation2 + $0x8] sm:$0xff]
    %35 = vst [vmem:[#allocation1] ss:$2 sm:$0xff] %v31
    %v36 = vld.sshfl [vmem:[#allocation1] sm:$0xff pattern:$0x75316420]
    %v37 = vld.sshfl [vmem:[#allocation1 + $0x8] sm:$0xff pattern:$0x75316420]
    %s38 = scalar_lea.vmem [#allocation1], 16
    %39 = vst [vmem:[%s38] ss:$2 sm:$0xff] %v32
    %v40 = vld.sshfl [vmem:[#allocation1 + $0x10] sm:$0xff pattern:$0x75316420]
    %v41 = vld.sshfl [vmem:[#allocation1 + $0x18] sm:$0xff pattern:$0x75316420]
    %vm46 = vcmask 1043456
    %v47 = vsel %vm46, %v36, 0.0
    %v48 = vrot.slane %v47, 4
    %v49 = vadd.f32 %v47, %v48
    %v50 = vrot.slane %v49, 2
    %v51 = vadd.f32 %v49, %v50
    %v52 = vrot.slane %v51, 1
    %v53 = vadd.f32 %v51, %v52
    %v54 = vsel %vm46, %v37, 0.0
    %v55 = vrot.slane %v54, 4
    %v56 = vadd.f32 %v54, %v55
    %v57 = vrot.slane %v56, 2
    %v58 = vadd.f32 %v56, %v57
    %v59 = vrot.slane %v58, 1
    %v60 = vadd.f32 %v58, %v59
    %v61 = vsel %vm46, %v40, 0.0
    %v62 = vrot.slane %v61, 4
    %v63 = vadd.f32 %v61, %v62
    %v64 = vrot.slane %v63, 2
    %v65 = vadd.f32 %v63, %v64
    %v66 = vrot.slane %v65, 1
    %v67 = vadd.f32 %v65, %v66
    %v68 = vsel %vm46, %v41, 0.0
    %v69 = vrot.slane %v68, 4
    %v70 = vadd.f32 %v68, %v69
    %v71 = vrot.slane %v70, 2
    %v72 = vadd.f32 %v70, %v71
    %v73 = vrot.slane %v72, 1
    %v74 = vadd.f32 %v72, %v73
    %v75 = vrcp.pop 4.0
    %v76 = vmul.f32 4.0, %v75
    %v77 = vsub.f32 1.0, %v76
    %v78 = vmul.f32 %v75, %v77
    %v79 = vadd.f32 %v75, %v78
    %vm80 = vweird.f32 %v75
    %v81 = vsel %vm80, %v75, %v79
    %v82 = vmul.f32 %v53, %v81
    %v83 = vmul.f32 %v60, %v81
    %v84 = vmul.f32 %v67, %v81
    %v85 = vmul.f32 %v74, %v81
    %v86 = vmul.f32 %v31, %v31
    %v87 = vmul.f32 %v32, %v32
    %90 = vst [vmem:[#allocation1] ss:$2 sm:$0xff] %v86
    %v91 = vld.sshfl [vmem:[#allocation1] sm:$0xff pattern:$0x75316420]
    %v92 = vld.sshfl [vmem:[#allocation1 + $0x8] sm:$0xff pattern:$0x75316420]
    %s93 = scalar_lea.vmem [#allocation1], 16
    %94 = vst [vmem:[%s93] ss:$2 sm:$0xff] %v87
    %v95 = vld.sshfl [vmem:[#allocation1 + $0x10] sm:$0xff pattern:$0x75316420]
    %v96 = vld.sshfl [vmem:[#allocation1 + $0x18] sm:$0xff pattern:$0x75316420]
    %v101 = vsel %vm46, %v91, 0.0
    %v102 = vrot.slane %v101, 4
    %v103 = vadd.f32 %v101, %v102
    %v104 = vrot.slane %v103, 2
    %v105 = vadd.f32 %v103, %v104
    %v106 = vrot.slane %v105, 1
    %v107 = vadd.f32 %v105, %v106
    %v108 = vsel %vm46, %v92, 0.0
    %v109 = vrot.slane %v108, 4
    %v110 = vadd.f32 %v108, %v109
    %v111 = vrot.slane %v110, 2
    %v112 = vadd.f32 %v110, %v111
    %v113 = vrot.slane %v112, 1
    %v114 = vadd.f32 %v112, %v113
    %v115 = vsel %vm46, %v95, 0.0
    %v116 = vrot.slane %v115, 4
    %v117 = vadd.f32 %v115, %v116
    %v118 = vrot.slane %v117, 2
    %v119 = vadd.f32 %v117, %v118
    %v120 = vrot.slane %v119, 1
    %v121 = vadd.f32 %v119, %v120
    %v122 = vsel %vm46, %v96, 0.0
    %v123 = vrot.slane %v122, 4
    %v124 = vadd.f32 %v122, %v123
    %v125 = vrot.slane %v124, 2
    %v126 = vadd.f32 %v124, %v125
    %v127 = vrot.slane %v126, 1
    %v128 = vadd.f32 %v126, %v127
    %v129 = vmul.f32 %v107, %v81
    %v130 = vmul.f32 %v114, %v81
    %v131 = vmul.f32 %v121, %v81
    %v132 = vmul.f32 %v128, %v81
    %v133 = vmul.f32 %v82, %v82
    %v134 = vmul.f32 %v83, %v83
    %v135 = vmul.f32 %v84, %v84
    %v136 = vmul.f32 %v85, %v85
    %v137 = vsub.f32 %v129, %v133
    %v138 = vsub.f32 %v130, %v134
    %v139 = vsub.f32 %v131, %v135
    %v140 = vsub.f32 %v132, %v136
    %v141 = vmax.f32 %v137, 0.0
    %v142 = vmax.f32 %v138, 0.0
    %v143 = vmax.f32 %v139, 0.0
    %v144 = vmax.f32 %v140, 0.0
    %v145 = vadd.f32 %v141, 1e-05
    %v146 = vadd.f32 %v142, 1e-05
    %v147 = vadd.f32 %v143, 1e-05
    %v148 = vadd.f32 %v144, 1e-05
    %v149 = vrsqrt.pop %v145
    %v150 = vmul.f32 %v149, %v145
    %v151 = vmul.f32 %v150, %v149
    %v152 = vmul.f32 0.5, %v151
    %v153 = vsub.f32 1.5, %v152
    %v154 = vmul.f32 %v149, %v153
    %vm155 = vweird.f32 %v145
    %vm156 = vweird.f32 %v149
    %vm157 = vmor %vm155, %vm156
    %v158 = vsel %vm157, %v149, %v154
    %v159 = vrsqrt.pop %v146
    %v160 = vmul.f32 %v159, %v146
    %v161 = vmul.f32 %v160, %v159
    %v162 = vmul.f32 0.5, %v161
    %v163 = vsub.f32 1.5, %v162
    %v164 = vmul.f32 %v159, %v163
    %vm165 = vweird.f32 %v146
    %vm166 = vweird.f32 %v159
    %vm167 = vmor %vm165, %vm166
    %v168 = vsel %vm167, %v159, %v164
    %v169 = vrsqrt.pop %v147
    %v170 = vmul.f32 %v169, %v147
    %v171 = vmul.f32 %v170, %v169
    %v172 = vmul.f32 0.5, %v171
    %v173 = vsub.f32 1.5, %v172
    %v174 = vmul.f32 %v169, %v173
    %vm175 = vweird.f32 %v147
    %vm176 = vweird.f32 %v169
    %vm177 = vmor %vm175, %vm176
    %v178 = vsel %vm177, %v169, %v174
    %v179 = vrsqrt.pop %v148
    %v180 = vmul.f32 %v179, %v148
    %v181 = vmul.f32 %v180, %v179
    %v182 = vmul.f32 0.5, %v181
    %v183 = vsub.f32 1.5, %v182
    %v184 = vmul.f32 %v179, %v183
    %vm185 = vweird.f32 %v148
    %vm186 = vweird.f32 %v179
    %vm187 = vmor %vm185, %vm186
    %v188 = vsel %vm187, %v179, %v184
    %v189 = vld [vmem:[%s1] sm:$0xf]
    %v190 = vld [vmem:[%s2] sm:$0xf]
    %v195 = vrot.slane %v83, 4
    %v196 = vrot.slane %v85, 4
    %v197 = vsel %vm46, %v82, %v195
    %v198 = vsel %vm46, %v84, %v196
    %v201 = vsub.f32 %v31, %v197
    %v202 = vsub.f32 %v32, %v198
    %v207 = vrot.slane %v168, 4
    %v208 = vrot.slane %v188, 4
    %v209 = vsel %vm46, %v158, %v207
    %v210 = vsel %vm46, %v178, %v208
    %v213 = vmul.f32 %v201, %v209
    %v214 = vmul.f32 %v202, %v210
    %216 = vset.pattern.permute.xlu0 0
    %217 = vperm.xlu0 %216, %v189
    %v218 = vpop.permute.xlu0 %217
    %v220 = vunpack.c.l.s4 839922192
    %v221 = vunpack.c.0.s8 %v220
    %v222 = vperm.slane %v218, %v221
    %v224 = vmul.f32 %v213, %v222
    %v225 = vmul.f32 %v214, %v222
    %227 = vset.pattern.permute.xlu0 0
    %228 = vperm.xlu0 %227, %v190
    %v229 = vpop.permute.xlu0 %228
    %v231 = vunpack.c.l.s4 839922192
    %v232 = vunpack.c.0.s8 %v231
    %v233 = vperm.slane %v229, %v232
    %v235 = vadd.f32 %v224, %v233
    %v236 = vadd.f32 %v225, %v233
    %237 = vst [vmem:[#allocation5] sm:$0xff] %v235
    %238 = vst [vmem:[#allocation5 + $0x8] sm:$0xff] %v236
    // Predicated region
    $region18: #{tpu_custom_call.1} parent=1 // pred_check
      _
    $region19: #{tpu_custom_call.1} parent=1 // pred_check_branch
      %240 = sbr.rel (0) target = $region21
    $region20: #{tpu_custom_call.1} parent=1 // pred_region
      %242 = vsyncadd [#allocation4], 0
      %s243 = sshll.u32 [#allocation5], 4
      %s244 = int_to_ptr.vmem [resolvable:$true] %s243
      %s245 = sshll.u32 %s3, 4
      %s246 = int_to_ptr.hbm [resolvable:$true] %s245
      %251 = dma.vmem_to_hbm [thread:$0]  %s244, 256, %s246, [#allocation4], 128, 128, 8
    $region21: #{tpu_custom_call.1} parent=1 // pred_fallthru
      _
    // Predicated region
    $region22: #{tpu_custom_call.1} parent=1 // pred_check
      _
    $region23: #{tpu_custom_call.1} parent=1 // pred_check_branch
      %253 = sbr.rel (0) target = $region25
    $region24: #{tpu_custom_call.1} parent=1 // pred_region
      %255 = dma.done [#allocation4], 256
    $region25: #{tpu_custom_call.1} parent=1 // pred_fallthru
      _
    %256 = vsyncpa [#allocation3], 1
    %257 = vsyncpa [#allocation4], 1

</llo_original>
